<compile_context>
chip_gen: v7x
topology: tpu7x:2x2x1
jax: 0.10.0
libtpu: 0.0.40
codegen_flags: <defaults>
</compile_context>

<pallas_src>
import jax
import jax.numpy as jnp
from jax import lax
from jax.experimental import pallas as pl
from jax.experimental.pallas import tpu as pltpu


def _round_up(x, m):
    return (x + m - 1) // m * m


def _make_fcn_kernel(relu_flags, sub_rows, n_sub, num_classes):
    """Fused MLP kernel for len(relu_flags) Linear layers.

    Kernel refs: (x, w0, b0, w1, b1, ..., w_last, b_last, out).
      x      : (batch_tile, in_dim)          input dtype (f32)
      w_i    : (out_i, in_i)                 PyTorch layout, input dtype
      b_i    : (out_i, 1)   hidden layers    float32 (lane-broadcast bias)
      b_last : (1, ncls_pad) classifier      float32 (sublane-broadcast bias)
      out    : (batch_tile, num_classes)     float32
    Hidden layers run transposed (features x sub_rows, lane-dense); the final
    classifier matmul contracts the feature axis so the logits come out in
    natural (rows, classes) orientation with no transpose anywhere.
    """
    n_layers = len(relu_flags)

    def kernel(*refs):
        x_ref = refs[0]
        out_ref = refs[-1]
        w_refs = [refs[1 + 2 * i] for i in range(n_layers)]
        b_refs = [refs[2 + 2 * i] for i in range(n_layers)]

        @pl.loop(0, n_sub)
        def _(j):
            row0 = pl.multiple_of(j * sub_rows, sub_rows)
            xt = x_ref[pl.ds(row0, sub_rows), :]            # (sub_rows, in_dim)

            # --- hidden layers, transposed orientation: h = (feat, sub_rows) ---
            h = None
            for li in range(n_layers - 1):
                w = w_refs[li][...]                          # (out_i, in_i)
                b = b_refs[li][...]                          # (out_i, 1)
                if li == 0:
                    # (out0, in) x (sub, in) -> (out0, sub): contract both last
                    # dims, so x never needs a transpose (in kernel or wrapper).
                    y = lax.dot_general(w, xt, (((1,), (1,)), ((), ())),
                                        preferred_element_type=jnp.float32)
                else:
                    y = jnp.dot(w, h, preferred_element_type=jnp.float32)
                y = y + b                                    # f32 epilogue
                if relu_flags[li]:
                    y = jnp.maximum(y, 0.0)
                h = y.astype(w.dtype)                        # no-op for f32

            # --- final classifier, produced directly in natural orientation ---
            w = w_refs[-1][...]                              # (ncls_pad, feat)
            b = b_refs[-1][...]                              # (1, ncls_pad)
            if n_layers == 1:
                logits = lax.dot_general(xt, w, (((1,), (1,)), ((), ())),
                                         preferred_element_type=jnp.float32)
            else:
                # contract h dim0 (feat) with w dim1 (feat) -> (sub, ncls_pad)
                logits = lax.dot_general(h, w, (((0,), (1,)), ((), ())),
                                         preferred_element_type=jnp.float32)
            logits = logits + b
            out_ref[pl.ds(row0, sub_rows), :] = (
                logits[:, :num_classes].astype(out_ref.dtype))

    return kernel


def fcn_forward(x, params, *, loss_type="ce", batch_tile=None):
    """Fused FCN forward.

    x      : (B, input_dim) float32
    params : list of (w, b); w: (out_features, in_features) [nn.Linear layout],
             b: (out_features,), float32.
    Returns logits (B, num_classes) float32.
    """
    B, in_dim = x.shape
    n_layers = len(params)
    num_classes = params[-1][0].shape[0]

    LANE = 128
    SUB_MAX = 256      # rows per inner sub-step (bounds vreg pressure)
    CAP = 8192         # max rows per grid step (amortizes ~0.35us step cost)

    # Adaptive batch tile: big enough to amortize per-step overhead, but not
    # overshooting B by nearly a whole tile.
    if batch_tile is None:
        if B <= CAP:
            batch_tile = _round_up(max(B, 1), LANE)
        else:
            n_steps = -(-B // CAP)
            batch_tile = min(CAP, _round_up(-(-B // n_steps), LANE))
    batch_tile = max(LANE, _round_up(batch_tile, LANE))
    sub_rows = SUB_MAX if batch_tile % SUB_MAX == 0 else LANE
    n_sub = batch_tile // sub_rows
    B_pad = _round_up(B, batch_tile)
    grid = (B_pad // batch_tile,)

    # ReLU after every hidden Linear; skipped on the last hidden Linear only
    # for contrastive loss; never after the final classifier Linear.
    relu_flags = [
        (li < n_layers - 1)
        and not (loss_type == "contrastive" and li == n_layers - 2)
        for li in range(n_layers)
    ]

    # Only a batch pad (no transpose / dtype pass); no-op when B % batch_tile == 0.
    x_p = x if B_pad == B else jnp.pad(x, ((0, B_pad - B), (0, 0)))

    args = [x_p]
    in_specs = [pl.BlockSpec((batch_tile, in_dim), lambda i: (i, 0))]
    for li, (w, b) in enumerate(params):
        out_f, _ = w.shape
        if li < n_layers - 1:
            w_a = w.astype(x.dtype)
            b_a = b.astype(jnp.float32).reshape(out_f, 1)
        else:
            # Pad classifier out-dim to a sublane multiple; the padded logits
            # columns are sliced off inside the kernel before the store.
            ncls_pad = _round_up(out_f, 8)
            w_a = jnp.pad(w.astype(x.dtype), ((0, ncls_pad - out_f), (0, 0)))
            b_a = jnp.pad(b.astype(jnp.float32),
                          (0, ncls_pad - out_f)).reshape(1, ncls_pad)
        args += [w_a, b_a]
        # Whole (tiny) weight/bias arrays resident every grid step.
        in_specs += [pl.BlockSpec(w_a.shape, lambda i: (0, 0)),
                     pl.BlockSpec(b_a.shape, lambda i: (0, 0))]

    out_spec = pl.BlockSpec((batch_tile, num_classes), lambda i: (i, 0))

    # Advisory cost estimate: the call is HBM-bound on streaming x / logits.
    flops = 2 * B_pad * sum(w.shape[0] * w.shape[1] for (w, _) in params)
    bytes_accessed = int(
        x_p.size * x_p.dtype.itemsize
        + B_pad * num_classes * 4
        + sum(a.size * a.dtype.itemsize for a in args[1:]))

    out = pl.pallas_call(
        _make_fcn_kernel(relu_flags, sub_rows, n_sub, num_classes),
        out_shape=jax.ShapeDtypeStruct((B_pad, num_classes), jnp.float32),
        grid_spec=pltpu.PrefetchScalarGridSpec(
            num_scalar_prefetch=0,
            grid=grid,
            in_specs=in_specs,
            out_specs=out_spec,
        ),
        compiler_params=pltpu.CompilerParams(
            dimension_semantics=("parallel",),
            vmem_limit_bytes=32 * 1024 * 1024),
        cost_estimate=pl.CostEstimate(flops=flops, transcendentals=0,
                                      bytes_accessed=bytes_accessed),
    )(*args)

    return out if B_pad == B else out[:B]


def init_params(key, dims, num_classes):
    """PyTorch nn.Linear-style init: w ~ U(-1/sqrt(fan_in), .) with shape
    (out_features, in_features), b with shape (out_features,)."""
    layer_dims = list(zip(dims[:-1], dims[1:])) + [(dims[-1], num_classes)]
    params = []
    for (fan_in, fan_out) in layer_dims:
        key, kw, kb = jax.random.split(key, 3)
        bound = 1.0 / jnp.sqrt(fan_in)
        w = jax.random.uniform(kw, (fan_out, fan_in), jnp.float32, -bound, bound)
        b = jax.random.uniform(kb, (fan_out,), jnp.float32, -bound, bound)
        params.append((w, b))
    return params


def fcn_reference(x, params, *, loss_type="ce"):
    """Pure-JAX f32 reference (highest-precision matmuls)."""
    n = len(params)
    h = x
    for i, (w, b) in enumerate(params):
        h = jnp.dot(h, w.T, precision=jax.lax.Precision.HIGHEST) + b
        if i < n - 1 and not (loss_type == "contrastive" and i == n - 2):
            h = jnp.maximum(h, 0.0)
    return h


if __name__ == "__main__":
    # Module hyperparameters (consistent with FCN.__init__)
    input_dim = 16
    feature_dim = 8
    network_dimensions = "32-32"
    num_classes = 4
    loss_type = "ce"   # not 'contrastive' -> ReLU after every hidden Linear

    dims = [input_dim] + [int(d) for d in network_dimensions.split("-")] + [feature_dim]

    key = jax.random.PRNGKey(0)
    key, kx, kp, kx2 = jax.random.split(key, 4)
    params = init_params(kp, dims, num_classes)

    # Tolerance note: the kernel uses the MXU's default f32 matmul precision,
    # the reference uses Precision.HIGHEST, so allow a small numeric gap.
    TOL = 2e-2

    # Small case: single grid step, single inner sub-step.
    batch = 8
    x = jax.random.normal(kx, (batch, input_dim), dtype=jnp.float32)
    logits = jax.block_until_ready(fcn_forward(x, params, loss_type=loss_type))
    ref = fcn_reference(x, params, loss_type=loss_type)
    assert logits.shape == (batch, num_classes)
    assert jnp.allclose(logits, ref, atol=TOL, rtol=TOL), (
        "max abs err: %g" % float(jnp.max(jnp.abs(logits - ref))))

    # Larger, non-aligned case: exercises the batch grid (2 steps), the inner
    # sub-row loop (2 sub-steps) and the pad / final-slice path.
    batch2 = 1000
    x2 = jax.random.normal(kx2, (batch2, input_dim), dtype=jnp.float32)
    logits2 = jax.block_until_ready(
        fcn_forward(x2, params, loss_type=loss_type, batch_tile=512))
    ref2 = fcn_reference(x2, params, loss_type=loss_type)
    assert logits2.shape == (batch2, num_classes)
    assert jnp.allclose(logits2, ref2, atol=TOL, rtol=TOL), (
        "max abs err: %g" % float(jnp.max(jnp.abs(logits2 - ref2))))

    print("KERNEL_OK")
</pallas_src>

<mosaic_0001>
module attributes {stable_mosaic.version = 11 : i64} {
  func.func @kernel(%arg0: i32, %arg1: memref<128x16xf32, #tpu.memory_space<vmem>>, %arg2: memref<32x16xf32, #tpu.memory_space<vmem>>, %arg3: memref<32x1xf32, #tpu.memory_space<vmem>>, %arg4: memref<32x32xf32, #tpu.memory_space<vmem>>, %arg5: memref<32x1xf32, #tpu.memory_space<vmem>>, %arg6: memref<8x32xf32, #tpu.memory_space<vmem>>, %arg7: memref<8x1xf32, #tpu.memory_space<vmem>>, %arg8: memref<8x8xf32, #tpu.memory_space<vmem>>, %arg9: memref<1x8xf32, #tpu.memory_space<vmem>>, %arg10: memref<128x4xf32, #tpu.memory_space<vmem>>) attributes {dimension_semantics = [#tpu.dimension_semantics<parallel>], iteration_bounds = array<i64: 1>, scalar_prefetch = 0 : i64, scratch_operands = 0 : i64, tpu.core_type = #tpu.core_type<tc>, window_params = [{transform_indices = @transform_0, window_bounds = array<i64: 128, 16>}, {pipeline_mode = #tpu.pipeline_mode<synchronous>, transform_indices = @transform_1, window_bounds = array<i64: 32, 16>}, {pipeline_mode = #tpu.pipeline_mode<synchronous>, transform_indices = @transform_2, window_bounds = array<i64: 32, 1>}, {pipeline_mode = #tpu.pipeline_mode<synchronous>, transform_indices = @transform_3, window_bounds = array<i64: 32, 32>}, {pipeline_mode = #tpu.pipeline_mode<synchronous>, transform_indices = @transform_4, window_bounds = array<i64: 32, 1>}, {pipeline_mode = #tpu.pipeline_mode<synchronous>, transform_indices = @transform_5, window_bounds = array<i64: 8, 32>}, {pipeline_mode = #tpu.pipeline_mode<synchronous>, transform_indices = @transform_6, window_bounds = array<i64: 8, 1>}, {pipeline_mode = #tpu.pipeline_mode<synchronous>, transform_indices = @transform_7, window_bounds = array<i64: 8, 8>}, {pipeline_mode = #tpu.pipeline_mode<synchronous>, transform_indices = @transform_8, window_bounds = array<i64: 1, 8>}, {transform_indices = @transform_9, window_bounds = array<i64: 128, 4>}]} {
    %c0_i32 = arith.constant 0 : i32
    %c1_i32 = arith.constant 1 : i32
    %0 = arith.muli %c0_i32, %c1_i32 : i32
    %c0_i32_0 = arith.constant 0 : i32
    %1 = arith.addi %c0_i32_0, %0 : i32
    %c128_i32 = arith.constant 128 : i32
    %2 = arith.muli %1, %c128_i32 : i32
    %3 = tpu.assume_multiple %2, 128 : i32
    %4 = arith.index_cast %3 : i32 to index
    %c0 = arith.constant 0 : index
    %5 = vector.load %arg1[%4, %c0] : memref<128x16xf32, #tpu.memory_space<vmem>>, vector<128x16xf32>
    %c0_1 = arith.constant 0 : index
    %c0_2 = arith.constant 0 : index
    %6 = vector.load %arg2[%c0_1, %c0_2] : memref<32x16xf32, #tpu.memory_space<vmem>>, vector<32x16xf32>
    %c0_3 = arith.constant 0 : index
    %c0_4 = arith.constant 0 : index
    %7 = vector.load %arg3[%c0_3, %c0_4] : memref<32x1xf32, #tpu.memory_space<vmem>>, vector<32x1xf32>
    %cst = arith.constant dense<0.000000e+00> : vector<32x128xf32>
    %8 = tpu.matmul %6, %5, %cst {dimension_numbers = #tpu.dot_dimension_numbers<[1], [1], [0], [0], [0, 0, 1, 0], [], []>} : vector<32x16xf32>, vector<128x16xf32>, vector<32x128xf32> -> vector<32x128xf32>
    %9 = vector.broadcast %7 : vector<32x1xf32> to vector<32x128xf32>
    %10 = arith.addf %8, %9 : vector<32x128xf32>
    %cst_5 = arith.constant 0.000000e+00 : f32
    %11 = vector.broadcast %cst_5 : f32 to vector<32x128xf32>
    %12 = arith.maximumf %10, %11 : vector<32x128xf32>
    %c0_6 = arith.constant 0 : index
    %c0_7 = arith.constant 0 : index
    %13 = vector.load %arg4[%c0_6, %c0_7] : memref<32x32xf32, #tpu.memory_space<vmem>>, vector<32x32xf32>
    %c0_8 = arith.constant 0 : index
    %c0_9 = arith.constant 0 : index
    %14 = vector.load %arg5[%c0_8, %c0_9] : memref<32x1xf32, #tpu.memory_space<vmem>>, vector<32x1xf32>
    %cst_10 = arith.constant dense<0.000000e+00> : vector<32x128xf32>
    %15 = tpu.matmul %13, %12, %cst_10 {dimension_numbers = #tpu.dot_dimension_numbers<[1], [0], [0], [1], [0, 0, 1, 1], [], []>} : vector<32x32xf32>, vector<32x128xf32>, vector<32x128xf32> -> vector<32x128xf32>
    %16 = vector.broadcast %14 : vector<32x1xf32> to vector<32x128xf32>
    %17 = arith.addf %15, %16 : vector<32x128xf32>
    %cst_11 = arith.constant 0.000000e+00 : f32
    %18 = vector.broadcast %cst_11 : f32 to vector<32x128xf32>
    %19 = arith.maximumf %17, %18 : vector<32x128xf32>
    %c0_12 = arith.constant 0 : index
    %c0_13 = arith.constant 0 : index
    %20 = vector.load %arg6[%c0_12, %c0_13] : memref<8x32xf32, #tpu.memory_space<vmem>>, vector<8x32xf32>
    %c0_14 = arith.constant 0 : index
    %c0_15 = arith.constant 0 : index
    %21 = vector.load %arg7[%c0_14, %c0_15] : memref<8x1xf32, #tpu.memory_space<vmem>>, vector<8x1xf32>
    %cst_16 = arith.constant dense<0.000000e+00> : vector<8x128xf32>
    %22 = tpu.matmul %20, %19, %cst_16 {dimension_numbers = #tpu.dot_dimension_numbers<[1], [0], [0], [1], [0, 0, 1, 1], [], []>} : vector<8x32xf32>, vector<32x128xf32>, vector<8x128xf32> -> vector<8x128xf32>
    %23 = vector.broadcast %21 : vector<8x1xf32> to vector<8x128xf32>
    %24 = arith.addf %22, %23 : vector<8x128xf32>
    %cst_17 = arith.constant 0.000000e+00 : f32
    %25 = vector.broadcast %cst_17 : f32 to vector<8x128xf32>
    %26 = arith.maximumf %24, %25 : vector<8x128xf32>
    %c0_18 = arith.constant 0 : index
    %c0_19 = arith.constant 0 : index
    %27 = vector.load %arg8[%c0_18, %c0_19] : memref<8x8xf32, #tpu.memory_space<vmem>>, vector<8x8xf32>
    %c0_20 = arith.constant 0 : index
    %c0_21 = arith.constant 0 : index
    %28 = vector.load %arg9[%c0_20, %c0_21] : memref<1x8xf32, #tpu.memory_space<vmem>>, vector<1x8xf32>
    %cst_22 = arith.constant dense<0.000000e+00> : vector<128x8xf32>
    %29 = tpu.matmul %26, %27, %cst_22 {dimension_numbers = #tpu.dot_dimension_numbers<[0], [1], [1], [0], [0, 1, 1, 0], [], []>} : vector<8x128xf32>, vector<8x8xf32>, vector<128x8xf32> -> vector<128x8xf32>
    %30 = vector.broadcast %28 : vector<1x8xf32> to vector<128x8xf32>
    %31 = arith.addf %29, %30 : vector<128x8xf32>
    %32 = vector.extract_strided_slice %31 {offsets = [0, 0], sizes = [128, 4], strides = [1, 1]} : vector<128x8xf32> to vector<128x4xf32>
    %33 = arith.index_cast %3 : i32 to index
    %c0_23 = arith.constant 0 : index
    %34 = vector.load %arg10[%33, %c0_23] : memref<128x4xf32, #tpu.memory_space<vmem>>, vector<128x4xf32>
    tpu.vector_store %arg10[%33, %c0_23], %32 {strides = array<i32>} : memref<128x4xf32, #tpu.memory_space<vmem>>, vector<128x4xf32>,
    %c1_i32_24 = arith.constant 1 : i32
    return
  }
  func.func @transform_0(%arg0: i32) -> (i32, i32) {
    %c0_i32 = arith.constant 0 : i32
    %c0_i32_0 = arith.constant 0 : i32
    return %arg0, %c0_i32 : i32, i32
  }
  func.func @transform_1(%arg0: i32) -> (i32, i32) {
    %c0_i32 = arith.constant 0 : i32
    %c0_i32_0 = arith.constant 0 : i32
    %c0_i32_1 = arith.constant 0 : i32
    return %c0_i32, %c0_i32_0 : i32, i32
  }
  func.func @transform_2(%arg0: i32) -> (i32, i32) {
    %c0_i32 = arith.constant 0 : i32
    %c0_i32_0 = arith.constant 0 : i32
    %c0_i32_1 = arith.constant 0 : i32
    return %c0_i32, %c0_i32_0 : i32, i32
  }
  func.func @transform_3(%arg0: i32) -> (i32, i32) {
    %c0_i32 = arith.constant 0 : i32
    %c0_i32_0 = arith.constant 0 : i32
    %c0_i32_1 = arith.constant 0 : i32
    return %c0_i32, %c0_i32_0 : i32, i32
  }
  func.func @transform_4(%arg0: i32) -> (i32, i32) {
    %c0_i32 = arith.constant 0 : i32
    %c0_i32_0 = arith.constant 0 : i32
    %c0_i32_1 = arith.constant 0 : i32
    return %c0_i32, %c0_i32_0 : i32, i32
  }
  func.func @transform_5(%arg0: i32) -> (i32, i32) {
    %c0_i32 = arith.constant 0 : i32
    %c0_i32_0 = arith.constant 0 : i32
    %c0_i32_1 = arith.constant 0 : i32
    return %c0_i32, %c0_i32_0 : i32, i32
  }
  func.func @transform_6(%arg0: i32) -> (i32, i32) {
    %c0_i32 = arith.constant 0 : i32
    %c0_i32_0 = arith.constant 0 : i32
    %c0_i32_1 = arith.constant 0 : i32
    return %c0_i32, %c0_i32_0 : i32, i32
  }
  func.func @transform_7(%arg0: i32) -> (i32, i32) {
    %c0_i32 = arith.constant 0 : i32
    %c0_i32_0 = arith.constant 0 : i32
    %c0_i32_1 = arith.constant 0 : i32
    return %c0_i32, %c0_i32_0 : i32, i32
  }
  func.func @transform_8(%arg0: i32) -> (i32, i32) {
    %c0_i32 = arith.constant 0 : i32
    %c0_i32_0 = arith.constant 0 : i32
    %c0_i32_1 = arith.constant 0 : i32
    return %c0_i32, %c0_i32_0 : i32, i32
  }
  func.func @transform_9(%arg0: i32) -> (i32, i32) {
    %c0_i32 = arith.constant 0 : i32
    %c0_i32_0 = arith.constant 0 : i32
    return %arg0, %c0_i32 : i32, i32
  }
}

</mosaic_0001>

<llo_original>
// kernel: tpu_custom_call.1
$region0: #{tpu_custom_call.1}
  #allocation0 [shape = 'u32[]', space=smem, size = 0x4, offset = 0x4, fixed_abs, tag = 'smem constant byte address 0x4 - core index']
  #allocation1 [shape = 'u32[144,128]{1,0:T(1,128)}', space=vmem, size = 0x12000, scoped, tag = 'internal scratch']
  %s0 = inlined_call_operand.vmem [shape: f32[128,16], index: 0, kind: input, shape index: {}]
  %s1 = inlined_call_operand.vmem [shape: f32[32,16], index: 1, kind: input, shape index: {}]
  %s2 = inlined_call_operand.vmem [shape: f32[32,1], index: 2, kind: input, shape index: {}]
  %s3 = inlined_call_operand.vmem [shape: f32[32,32], index: 3, kind: input, shape index: {}]
  %s4 = inlined_call_operand.vmem [shape: f32[32,1], index: 4, kind: input, shape index: {}]
  %s5 = inlined_call_operand.vmem [shape: f32[8,32], index: 5, kind: input, shape index: {}]
  %s6 = inlined_call_operand.vmem [shape: f32[8,1], index: 6, kind: input, shape index: {}]
  %s7 = inlined_call_operand.vmem [shape: f32[8,8], index: 7, kind: input, shape index: {}]
  %s8 = inlined_call_operand.vmem [shape: f32[1,8], index: 8, kind: input, shape index: {}]
  %s9 = inlined_call_operand.vmem [shape: f32[128,4], index: 9, kind: output, shape index: {}]
  %s10 = sld [smem:[#allocation0]]
  $region46: #{tpu_custom_call.1} parent=0
    _
  %s12 = ssub.s32 1, %s10
  %s13 = scalar_select 0, %s12, %s10
  // Predicated region
  $region2: #{tpu_custom_call.1} parent=0 // pred_check
    _
  $region3: #{tpu_custom_call.1} parent=0 // pred_check_branch
    %15 = sbr.rel (0) target = $region5
  $region4: #{tpu_custom_call.1} parent=0 // pred_region
    _
  $region5: #{tpu_custom_call.1} parent=0 // pred_fallthru
    _
  // Predicated region
  $region6: #{tpu_custom_call.1} parent=0 // pred_check
    _
  $region7: #{tpu_custom_call.1} parent=0 // pred_check_branch
    %17 = sbr.rel (0) target = $region9
  $region8: #{tpu_custom_call.1} parent=0 // pred_region
    _
  $region9: #{tpu_custom_call.1} parent=0 // pred_fallthru
    _
  // Predicated region
  $region10: #{tpu_custom_call.1} parent=0 // pred_check
    _
  $region11: #{tpu_custom_call.1} parent=0 // pred_check_branch
    %19 = sbr.rel (0) target = $region13
  $region12: #{tpu_custom_call.1} parent=0 // pred_region
    _
  $region13: #{tpu_custom_call.1} parent=0 // pred_fallthru
    _
  // Predicated region
  $region14: #{tpu_custom_call.1} parent=0 // pred_check
    _
  $region15: #{tpu_custom_call.1} parent=0 // pred_check_branch
    %21 = sbr.rel (0) target = $region17
  $region16: #{tpu_custom_call.1} parent=0 // pred_region
    _
  $region17: #{tpu_custom_call.1} parent=0 // pred_fallthru
    _
  // Predicated region
  $region18: #{tpu_custom_call.1} parent=0 // pred_check
    _
  $region19: #{tpu_custom_call.1} parent=0 // pred_check_branch
    %23 = sbr.rel (0) target = $region21
  $region20: #{tpu_custom_call.1} parent=0 // pred_region
    _
  $region21: #{tpu_custom_call.1} parent=0 // pred_fallthru
    _
  // Predicated region
  $region22: #{tpu_custom_call.1} parent=0 // pred_check
    _
  $region23: #{tpu_custom_call.1} parent=0 // pred_check_branch
    %25 = sbr.rel (0) target = $region25
  $region24: #{tpu_custom_call.1} parent=0 // pred_region
    _
  $region25: #{tpu_custom_call.1} parent=0 // pred_fallthru
    _
  // Predicated region
  $region26: #{tpu_custom_call.1} parent=0 // pred_check
    _
  $region27: #{tpu_custom_call.1} parent=0 // pred_check_branch
    %27 = sbr.rel (0) target = $region29
  $region28: #{tpu_custom_call.1} parent=0 // pred_region
    _
  $region29: #{tpu_custom_call.1} parent=0 // pred_fallthru
    _
  // Predicated region
  $region30: #{tpu_custom_call.1} parent=0 // pred_check
    _
  $region31: #{tpu_custom_call.1} parent=0 // pred_check_branch
    %29 = sbr.rel (0) target = $region33
  $region32: #{tpu_custom_call.1} parent=0 // pred_region
    _
  $region33: #{tpu_custom_call.1} parent=0 // pred_fallthru
    _
  // Predicated region
  $region34: #{tpu_custom_call.1} parent=0 // pred_check
    _
  $region35: #{tpu_custom_call.1} parent=0 // pred_check_branch
    %31 = sbr.rel (0) target = $region37
  $region36: #{tpu_custom_call.1} parent=0 // pred_region
    _
  $region37: #{tpu_custom_call.1} parent=0 // pred_fallthru
    _
  %v32 = vld [vmem:[%s0] sm:$0xff]
  %v33 = vld [vmem:[%s0 + $0x8] sm:$0xff]
  %v34 = vld [vmem:[%s0 + $0x10] sm:$0xff]
  %v35 = vld [vmem:[%s0 + $0x18] sm:$0xff]
  %v36 = vld [vmem:[%s0 + $0x20] sm:$0xff]
  %v37 = vld [vmem:[%s0 + $0x28] sm:$0xff]
  %v38 = vld [vmem:[%s0 + $0x30] sm:$0xff]
  %v39 = vld [vmem:[%s0 + $0x38] sm:$0xff]
  %v40 = vld [vmem:[%s0 + $0x40] sm:$0xff]
  %v41 = vld [vmem:[%s0 + $0x48] sm:$0xff]
  %v42 = vld [vmem:[%s0 + $0x50] sm:$0xff]
  %v43 = vld [vmem:[%s0 + $0x58] sm:$0xff]
  %v44 = vld [vmem:[%s0 + $0x60] sm:$0xff]
  %v45 = vld [vmem:[%s0 + $0x68] sm:$0xff]
  %v46 = vld [vmem:[%s0 + $0x70] sm:$0xff]
  %v47 = vld [vmem:[%s0 + $0x78] sm:$0xff]
  %v48 = vld [vmem:[%s1] sm:$0xff]
  %v49 = vld [vmem:[%s1 + $0x8] sm:$0xff]
  %v50 = vld [vmem:[%s1 + $0x10] sm:$0xff]
  %v51 = vld [vmem:[%s1 + $0x18] sm:$0xff]
  %v52 = vld [vmem:[%s2] sm:$0xff]
  %v53 = vld [vmem:[%s2 + $0x8] sm:$0xff]
  %v54 = vld [vmem:[%s2 + $0x10] sm:$0xff]
  %v55 = vld [vmem:[%s2 + $0x18] sm:$0xff]
  %57 = vset.pattern.permute.xlu0 0
  %58 = vperm.xlu0 %57, %v52
  %v59 = vpop.permute.xlu0 %58
  %62 = vset.pattern.permute.xlu0 0
  %63 = vperm.xlu0 %62, %v53
  %v64 = vpop.permute.xlu0 %63
  %67 = vset.pattern.permute.xlu0 0
  %68 = vperm.xlu0 %67, %v54
  %v69 = vpop.permute.xlu0 %68
  %72 = vset.pattern.permute.xlu0 0
  %73 = vperm.xlu0 %72, %v55
  %v74 = vpop.permute.xlu0 %73
  %vm76 = vcmask 130048
  %v78 = vsel %vm76, %v48, 0
  %v81 = vsel %vm76, %v49, 0
  %v84 = vsel %vm76, %v50, 0
  %v87 = vsel %vm76, %v51, 0
  %v90 = vsel %vm76, %v32, 0
  %v93 = vsel %vm76, %v33, 0
  %v96 = vsel %vm76, %v34, 0
  %v99 = vsel %vm76, %v35, 0
  %v102 = vsel %vm76, %v36, 0
  %v105 = vsel %vm76, %v37, 0
  %v108 = vsel %vm76, %v38, 0
  %v111 = vsel %vm76, %v39, 0
  %v114 = vsel %vm76, %v40, 0
  %v117 = vsel %vm76, %v41, 0
  %v120 = vsel %vm76, %v42, 0
  %v123 = vsel %vm76, %v43, 0
  %v126 = vsel %vm76, %v44, 0
  %v129 = vsel %vm76, %v45, 0
  %v132 = vsel %vm76, %v46, 0
  %v135 = vsel %vm76, %v47, 0
  %137 = vmatprep.subr.mxu0 0.0
  %138 = vmatpush1.xpose.msra.mxu0 %v90
  %139 = vmatprep.subr.mxu0 0.0
  %140 = vmatpush1.xpose.msra.mxu0 %v93
  %141 = vmatprep.subr.mxu0 0.0
  %142 = vmatpush1.xpose.msra.mxu0 %v96
  %143 = vmatprep.subr.mxu0 0.0
  %144 = vmatpush1.xpose.msra.mxu0 %v99
  %145 = vmatprep.subr.mxu0 0.0
  %146 = vmatpush1.xpose.msra.mxu0 %v102
  %147 = vmatprep.subr.mxu0 0.0
  %148 = vmatpush1.xpose.msra.mxu0 %v105
  %149 = vmatprep.subr.mxu0 0.0
  %150 = vmatpush1.xpose.msra.mxu0 %v108
  %151 = vmatprep.subr.mxu0 0.0
  %152 = vmatpush1.xpose.msra.mxu0 %v111
  %153 = vmatprep.subr.mxu0 0.0
  %154 = vmatpush1.xpose.msra.mxu0 %v114
  %155 = vmatprep.subr.mxu0 0.0
  %156 = vmatpush1.xpose.msra.mxu0 %v117
  %157 = vmatprep.subr.mxu0 0.0
  %158 = vmatpush1.xpose.msra.mxu0 %v120
  %159 = vmatprep.subr.mxu0 0.0
  %160 = vmatpush1.xpose.msra.mxu0 %v123
  %161 = vmatprep.subr.mxu0 0.0
  %162 = vmatpush1.xpose.msra.mxu0 %v126
  %163 = vmatprep.subr.mxu0 0.0
  %164 = vmatpush1.xpose.msra.mxu0 %v129
  %165 = vmatprep.subr.mxu0 0.0
  %166 = vmatpush1.xpose.msra.mxu0 %v132
  %167 = vmatprep.subr.mxu0 0.0
  %168 = vmatpush1.xpose.msra.mxu0 %v135
  %169 = vmatprep.subr.mxu0 0.0
  %170 = vmatpush1.xpose.msra.mxu0 0.0
  %171 = vmatprep.subr.mxu0 0.0
  %172 = vmatpush1.xpose.msra.mxu0 0.0
  %173 = vmatprep.subr.mxu0 0.0
  %174 = vmatpush1.xpose.msra.mxu0 0.0
  %175 = vmatprep.subr.mxu0 0.0
  %176 = vmatpush1.xpose.msra.mxu0 0.0
  %177 = vmatprep.subr.mxu0 0.0
  %178 = vmatpush1.xpose.msra.mxu0 0.0
  %179 = vmatprep.subr.mxu0 0.0
  %180 = vmatpush1.xpose.msra.mxu0 0.0
  %181 = vmatprep.subr.mxu0 0.0
  %182 = vmatpush1.xpose.msra.mxu0 0.0
  %183 = vmatprep.subr.mxu0 0.0
  %184 = vmatpush1.xpose.msra.mxu0 0.0
  %185 = vmatprep.subr.mxu0 0.0
  %186 = vmatpush1.xpose.msra.mxu0 0.0
  %187 = vmatprep.subr.mxu0 0.0
  %188 = vmatpush1.xpose.msra.mxu0 0.0
  %189 = vmatprep.subr.mxu0 0.0
  %190 = vmatpush1.xpose.msra.mxu0 0.0
  %191 = vmatprep.subr.mxu0 0.0
  %192 = vmatpush1.xpose.msra.mxu0 0.0
  %193 = vmatprep.subr.mxu0 0.0
  %194 = vmatpush1.xpose.msra.mxu0 0.0
  %195 = vmatprep.subr.mxu0 0.0
  %196 = vmatpush1.xpose.msra.mxu0 0.0
  %197 = vmatprep.subr.mxu0 0.0
  %198 = vmatpush1.xpose.msra.mxu0 0.0
  %199 = vmatprep.subr.mxu0 0.0
  %200 = vmatpush1.xpose.msra.mxu0 0.0
  %201 = vmatprep.mubr.f32.mxu0 0.0
  %202 = vmatmul.mubr.f32.gmra.mrb[0].mxu0 %v78
  %v203 = vpop.f32.mrb[0].mxu0
  %v204 = vadd.f32 %v59, %v203
  %v205 = vpop.f32.mrb[0].mxu0
  %206 = vmatprep.mubr.f32.mxu0 0.0
  %207 = vmatmul.mubr.f32.gmra.mrb[0].mxu0 %v81
  %v208 = vpop.f32.mrb[0].mxu0
  %v209 = vadd.f32 %v64, %v208
  %v210 = vpop.f32.mrb[0].mxu0
  %211 = vmatprep.mubr.f32.mxu0 0.0
  %212 = vmatmul.mubr.f32.gmra.mrb[0].mxu0 %v84
  %v213 = vpop.f32.mrb[0].mxu0
  %v214 = vadd.f32 %v69, %v213
  %v215 = vpop.f32.mrb[0].mxu0
  %216 = vmatprep.mubr.f32.mxu0 0.0
  %217 = vmatmul.mubr.f32.gmra.mrb[0].mxu0 %v87
  %v218 = vpop.f32.mrb[0].mxu0
  %v219 = vadd.f32 %v74, %v218
  %v220 = vpop.f32.mrb[0].mxu0
  %221 = vdwg.mxu0
  %v222 = vmax.f32 %v204, 0.0
  %v223 = vmax.f32 %v209, 0.0
  %v224 = vmax.f32 %v214, 0.0
  %v225 = vmax.f32 %v219, 0.0
  %v226 = vld [vmem:[%s3] sm:$0xff]
  %v227 = vld [vmem:[%s3 + $0x8] sm:$0xff]
  %v228 = vld [vmem:[%s3 + $0x10] sm:$0xff]
  %v229 = vld [vmem:[%s3 + $0x18] sm:$0xff]
  %v230 = vld [vmem:[%s4] sm:$0xff]
  %v231 = vld [vmem:[%s4 + $0x8] sm:$0xff]
  %v232 = vld [vmem:[%s4 + $0x10] sm:$0xff]
  %v233 = vld [vmem:[%s4 + $0x18] sm:$0xff]
  %235 = vset.pattern.permute.xlu0 0
  %236 = vperm.xlu0 %235, %v230
  %v237 = vpop.permute.xlu0 %236
  %240 = vset.pattern.permute.xlu0 0
  %241 = vperm.xlu0 %240, %v231
  %v242 = vpop.permute.xlu0 %241
  %245 = vset.pattern.permute.xlu0 0
  %246 = vperm.xlu0 %245, %v232
  %v247 = vpop.permute.xlu0 %246
  %250 = vset.pattern.permute.xlu0 0
  %251 = vperm.xlu0 %250, %v233
  %v252 = vpop.permute.xlu0 %251
  %vm254 = vcmask 261120
  %v256 = vsel %vm254, %v226, 0
  %v259 = vsel %vm254, %v227, 0
  %v262 = vsel %vm254, %v228, 0
  %v265 = vsel %vm254, %v229, 0
  %267 = vmatprep.subr.mxu0 0.0
  %268 = vmatpush1.msra.mxu0 %v222
  %269 = vmatprep.subr.mxu0 0.0
  %270 = vmatpush1.msra.mxu0 %v223
  %271 = vmatprep.subr.mxu0 0.0
  %272 = vmatpush1.msra.mxu0 %v224
  %273 = vmatprep.subr.mxu0 0.0
  %274 = vmatpush1.msra.mxu0 %v225
  %275 = vmatprep.subr.mxu0 0.0
  %276 = vmatpush1.msra.mxu0 0.0
  %277 = vmatprep.subr.mxu0 0.0
  %278 = vmatpush1.msra.mxu0 0.0
  %279 = vmatprep.subr.mxu0 0.0
  %280 = vmatpush1.msra.mxu0 0.0
  %281 = vmatprep.subr.mxu0 0.0
  %282 = vmatpush1.msra.mxu0 0.0
  %283 = vmatprep.subr.mxu0 0.0
  %284 = vmatpush1.msra.mxu0 0.0
  %285 = vmatprep.subr.mxu0 0.0
  %286 = vmatpush1.msra.mxu0 0.0
  %287 = vmatprep.subr.mxu0 0.0
  %288 = vmatpush1.msra.mxu0 0.0
  %289 = vmatprep.subr.mxu0 0.0
  %290 = vmatpush1.msra.mxu0 0.0
  %291 = vmatprep.subr.mxu0 0.0
  %292 = vmatpush1.msra.mxu0 0.0
  %293 = vmatprep.subr.mxu0 0.0
  %294 = vmatpush1.msra.mxu0 0.0
  %295 = vmatprep.subr.mxu0 0.0
  %296 = vmatpush1.msra.mxu0 0.0
  %297 = vmatprep.subr.mxu0 0.0
  %298 = vmatpush1.msra.mxu0 0.0
  %299 = vmatprep.subr.mxu0 0.0
  %300 = vmatpush1.msra.mxu0 0.0
  %301 = vmatprep.subr.mxu0 0.0
  %302 = vmatpush1.msra.mxu0 0.0
  %303 = vmatprep.subr.mxu0 0.0
  %304 = vmatpush1.msra.mxu0 0.0
  %305 = vmatprep.subr.mxu0 0.0
  %306 = vmatpush1.msra.mxu0 0.0
  %307 = vmatprep.subr.mxu0 0.0
  %308 = vmatpush1.msra.mxu0 0.0
  %309 = vmatprep.subr.mxu0 0.0
  %310 = vmatpush1.msra.mxu0 0.0
  %311 = vmatprep.subr.mxu0 0.0
  %312 = vmatpush1.msra.mxu0 0.0
  %313 = vmatprep.subr.mxu0 0.0
  %314 = vmatpush1.msra.mxu0 0.0
  %315 = vmatprep.subr.mxu0 0.0
  %316 = vmatpush1.msra.mxu0 0.0
  %317 = vmatprep.subr.mxu0 0.0
  %318 = vmatpush1.msra.mxu0 0.0
  %319 = vmatprep.subr.mxu0 0.0
  %320 = vmatpush1.msra.mxu0 0.0
  %321 = vmatprep.subr.mxu0 0.0
  %322 = vmatpush1.msra.mxu0 0.0
  %323 = vmatprep.subr.mxu0 0.0
  %324 = vmatpush1.msra.mxu0 0.0
  %325 = vmatprep.subr.mxu0 0.0
  %326 = vmatpush1.msra.mxu0 0.0
  %327 = vmatprep.subr.mxu0 0.0
  %328 = vmatpush1.msra.mxu0 0.0
  %329 = vmatprep.subr.mxu0 0.0
  %330 = vmatpush1.msra.mxu0 0.0
  %331 = vmatprep.mubr.f32.mxu0 0.0
  %332 = vmatmul.mubr.f32.gmra.mrb[0].mxu0 %v256
  %v333 = vpop.f32.mrb[0].mxu0
  %v334 = vadd.f32 %v237, %v333
  %v335 = vpop.f32.mrb[0].mxu0
  %336 = vmatprep.mubr.f32.mxu0 0.0
  %337 = vmatmul.mubr.f32.gmra.mrb[0].mxu0 %v259
  %v338 = vpop.f32.mrb[0].mxu0
  %v339 = vadd.f32 %v242, %v338
  %v340 = vpop.f32.mrb[0].mxu0
  %341 = vmatprep.mubr.f32.mxu0 0.0
  %342 = vmatmul.mubr.f32.gmra.mrb[0].mxu0 %v262
  %v343 = vpop.f32.mrb[0].mxu0
  %v344 = vadd.f32 %v247, %v343
  %v345 = vpop.f32.mrb[0].mxu0
  %346 = vmatprep.mubr.f32.mxu0 0.0
  %347 = vmatmul.mubr.f32.gmra.mrb[0].mxu0 %v265
  %v348 = vpop.f32.mrb[0].mxu0
  %v349 = vadd.f32 %v252, %v348
  %v350 = vpop.f32.mrb[0].mxu0
  %351 = vdwg.mxu0
  %v352 = vmax.f32 %v334, 0.0
  %v353 = vmax.f32 %v339, 0.0
  %v354 = vmax.f32 %v344, 0.0
  %v355 = vmax.f32 %v349, 0.0
  %v356 = vld [vmem:[%s5] sm:$0xff]
  %v357 = vld [vmem:[%s6] sm:$0xff]
  %359 = vset.pattern.permute.xlu0 0
  %360 = vperm.xlu0 %359, %v357
  %v361 = vpop.permute.xlu0 %360
  %v364 = vsel %vm254, %v356, 0
  %366 = vmatprep.subr.mxu0 0.0
  %367 = vmatpush1.msra.mxu0 %v352
  %368 = vmatprep.subr.mxu0 0.0
  %369 = vmatpush1.msra.mxu0 %v353
  %370 = vmatprep.subr.mxu0 0.0
  %371 = vmatpush1.msra.mxu0 %v354
  %372 = vmatprep.subr.mxu0 0.0
  %373 = vmatpush1.msra.mxu0 %v355
  %374 = vmatprep.subr.mxu0 0.0
  %375 = vmatpush1.msra.mxu0 0.0
  %376 = vmatprep.subr.mxu0 0.0
  %377 = vmatpush1.msra.mxu0 0.0
  %378 = vmatprep.subr.mxu0 0.0
  %379 = vmatpush1.msra.mxu0 0.0
  %380 = vmatprep.subr.mxu0 0.0
  %381 = vmatpush1.msra.mxu0 0.0
  %382 = vmatprep.subr.mxu0 0.0
  %383 = vmatpush1.msra.mxu0 0.0
  %384 = vmatprep.subr.mxu0 0.0
  %385 = vmatpush1.msra.mxu0 0.0
  %386 = vmatprep.subr.mxu0 0.0
  %387 = vmatpush1.msra.mxu0 0.0
  %388 = vmatprep.subr.mxu0 0.0
  %389 = vmatpush1.msra.mxu0 0.0
  %390 = vmatprep.subr.mxu0 0.0
  %391 = vmatpush1.msra.mxu0 0.0
  %392 = vmatprep.subr.mxu0 0.0
  %393 = vmatpush1.msra.mxu0 0.0
  %394 = vmatprep.subr.mxu0 0.0
  %395 = vmatpush1.msra.mxu0 0.0
  %396 = vmatprep.subr.mxu0 0.0
  %397 = vmatpush1.msra.mxu0 0.0
  %398 = vmatprep.subr.mxu0 0.0
  %399 = vmatpush1.msra.mxu0 0.0
  %400 = vmatprep.subr.mxu0 0.0
  %401 = vmatpush1.msra.mxu0 0.0
  %402 = vmatprep.subr.mxu0 0.0
  %403 = vmatpush1.msra.mxu0 0.0
  %404 = vmatprep.subr.mxu0 0.0
  %405 = vmatpush1.msra.mxu0 0.0
  %406 = vmatprep.subr.mxu0 0.0
  %407 = vmatpush1.msra.mxu0 0.0
  %408 = vmatprep.subr.mxu0 0.0
  %409 = vmatpush1.msra.mxu0 0.0
  %410 = vmatprep.subr.mxu0 0.0
  %411 = vmatpush1.msra.mxu0 0.0
  %412 = vmatprep.subr.mxu0 0.0
  %413 = vmatpush1.msra.mxu0 0.0
  %414 = vmatprep.subr.mxu0 0.0
  %415 = vmatpush1.msra.mxu0 0.0
  %416 = vmatprep.subr.mxu0 0.0
  %417 = vmatpush1.msra.mxu0 0.0
  %418 = vmatprep.subr.mxu0 0.0
  %419 = vmatpush1.msra.mxu0 0.0
  %420 = vmatprep.subr.mxu0 0.0
  %421 = vmatpush1.msra.mxu0 0.0
  %422 = vmatprep.subr.mxu0 0.0
  %423 = vmatpush1.msra.mxu0 0.0
  %424 = vmatprep.subr.mxu0 0.0
  %425 = vmatpush1.msra.mxu0 0.0
  %426 = vmatprep.subr.mxu0 0.0
  %427 = vmatpush1.msra.mxu0 0.0
  %428 = vmatprep.subr.mxu0 0.0
  %429 = vmatpush1.msra.mxu0 0.0
  %430 = vmatprep.mubr.f32.mxu0 0.0
  %431 = vmatmul.mubr.f32.gmra.mrb[0].mxu0 %v364
  %v432 = vpop.f32.mrb[0].mxu0
  %v433 = vadd.f32 %v361, %v432
  %v434 = vpop.f32.mrb[0].mxu0
  %435 = vdwg.mxu0
  %v436 = vmax.f32 %v433, 0.0
  %v437 = vld [vmem:[%s7] sm:$0xff]
  %v438 = vld [vmem:[%s8] sm:$0x1]
  %v440 = vlaneseq
  %v441 = vshrl.u32 %v440, 7
  %v442 = vsub.s32 0, %v441
  %v443 = vrot.slane %v438, %v442
  %445 = vxpose.xlu0.b32.start [1/16] %v436, 128
  %446 = vxpose.xlu0.b32.cont [2/16] 0.0, 128
  %447 = vxpose.xlu0.b32.cont [3/16] 0.0, 128
  %448 = vxpose.xlu0.b32.cont [4/16] 0.0, 128
  %449 = vxpose.xlu0.b32.cont [5/16] 0.0, 128
  %450 = vxpose.xlu0.b32.cont [6/16] 0.0, 128
  %451 = vxpose.xlu0.b32.cont [7/16] 0.0, 128
  %452 = vxpose.xlu0.b32.cont [8/16] 0.0, 128
  %453 = vxpose.xlu0.b32.cont [9/16] 0.0, 128
  %454 = vxpose.xlu0.b32.cont [10/16] 0.0, 128
  %455 = vxpose.xlu0.b32.cont [11/16] 0.0, 128
  %456 = vxpose.xlu0.b32.cont [12/16] 0.0, 128
  %457 = vxpose.xlu0.b32.cont [13/16] 0.0, 128
  %458 = vxpose.xlu0.b32.cont [14/16] 0.0, 128
  %459 = vxpose.xlu0.b32.cont [15/16] 0.0, 128
  %460 = vxpose.xlu0.b32.end [16/16] 0.0, 128
  %v461 = vpop.trf.xlu0
  %v462 = vpop.trf.xlu0
  %v463 = vpop.trf.xlu0
  %v464 = vpop.trf.xlu0
  %v465 = vpop.trf.xlu0
  %v466 = vpop.trf.xlu0
  %v467 = vpop.trf.xlu0
  %v468 = vpop.trf.xlu0
  %v469 = vpop.trf.xlu0
  %v470 = vpop.trf.xlu0
  %v471 = vpop.trf.xlu0
  %v472 = vpop.trf.xlu0
  %v473 = vpop.trf.xlu0
  %v474 = vpop.trf.xlu0
  %v475 = vpop.trf.xlu0
  %v476 = vpop.trf.xlu0
  %vm477 = vcmask 64512
  %v479 = vsel %vm477, %v461, 0
  %v482 = vsel %vm477, %v462, 0
  %v485 = vsel %vm477, %v463, 0
  %v488 = vsel %vm477, %v464, 0
  %v491 = vsel %vm477, %v465, 0
  %v494 = vsel %vm477, %v466, 0
  %v497 = vsel %vm477, %v467, 0
  %v500 = vsel %vm477, %v468, 0
  %v503 = vsel %vm477, %v469, 0
  %v506 = vsel %vm477, %v470, 0
  %v509 = vsel %vm477, %v471, 0
  %v512 = vsel %vm477, %v472, 0
  %v515 = vsel %vm477, %v473, 0
  %v518 = vsel %vm477, %v474, 0
  %v521 = vsel %vm477, %v475, 0
  %v524 = vsel %vm477, %v476, 0
  %v527 = vsel %vm477, %v437, 0
  %529 = vmatprep.subr.mxu0 0.0
  %530 = vmatpush1.xpose.msra.mxu0 %v527
  %531 = vmatprep.subr.mxu0 0.0
  %532 = vmatpush1.xpose.msra.mxu0 0.0
  %533 = vmatprep.subr.mxu0 0.0
  %534 = vmatpush1.xpose.msra.mxu0 0.0
  %535 = vmatprep.subr.mxu0 0.0
  %536 = vmatpush1.xpose.msra.mxu0 0.0
  %537 = vmatprep.subr.mxu0 0.0
  %538 = vmatpush1.xpose.msra.mxu0 0.0
  %539 = vmatprep.subr.mxu0 0.0
  %540 = vmatpush1.xpose.msra.mxu0 0.0
  %541 = vmatprep.subr.mxu0 0.0
  %542 = vmatpush1.xpose.msra.mxu0 0.0
  %543 = vmatprep.subr.mxu0 0.0
  %544 = vmatpush1.xpose.msra.mxu0 0.0
  %545 = vmatprep.subr.mxu0 0.0
  %546 = vmatpush1.xpose.msra.mxu0 0.0
  %547 = vmatprep.subr.mxu0 0.0
  %548 = vmatpush1.xpose.msra.mxu0 0.0
  %549 = vmatprep.subr.mxu0 0.0
  %550 = vmatpush1.xpose.msra.mxu0 0.0
  %551 = vmatprep.subr.mxu0 0.0
  %552 = vmatpush1.xpose.msra.mxu0 0.0
  %553 = vmatprep.subr.mxu0 0.0
  %554 = vmatpush1.xpose.msra.mxu0 0.0
  %555 = vmatprep.subr.mxu0 0.0
  %556 = vmatpush1.xpose.msra.mxu0 0.0
  %557 = vmatprep.subr.mxu0 0.0
  %558 = vmatpush1.xpose.msra.mxu0 0.0
  %559 = vmatprep.subr.mxu0 0.0
  %560 = vmatpush1.xpose.msra.mxu0 0.0
  %561 = vmatprep.subr.mxu0 0.0
  %562 = vmatpush1.xpose.msra.mxu0 0.0
  %563 = vmatprep.subr.mxu0 0.0
  %564 = vmatpush1.xpose.msra.mxu0 0.0
  %565 = vmatprep.subr.mxu0 0.0
  %566 = vmatpush1.xpose.msra.mxu0 0.0
  %567 = vmatprep.subr.mxu0 0.0
  %568 = vmatpush1.xpose.msra.mxu0 0.0
  %569 = vmatprep.subr.mxu0 0.0
  %570 = vmatpush1.xpose.msra.mxu0 0.0
  %571 = vmatprep.subr.mxu0 0.0
  %572 = vmatpush1.xpose.msra.mxu0 0.0
  %573 = vmatprep.subr.mxu0 0.0
  %574 = vmatpush1.xpose.msra.mxu0 0.0
  %575 = vmatprep.subr.mxu0 0.0
  %576 = vmatpush1.xpose.msra.mxu0 0.0
  %577 = vmatprep.subr.mxu0 0.0
  %578 = vmatpush1.xpose.msra.mxu0 0.0
  %579 = vmatprep.subr.mxu0 0.0
  %580 = vmatpush1.xpose.msra.mxu0 0.0
  %581 = vmatprep.subr.mxu0 0.0
  %582 = vmatpush1.xpose.msra.mxu0 0.0
  %583 = vmatprep.subr.mxu0 0.0
  %584 = vmatpush1.xpose.msra.mxu0 0.0
  %585 = vmatprep.subr.mxu0 0.0
  %586 = vmatpush1.xpose.msra.mxu0 0.0
  %587 = vmatprep.subr.mxu0 0.0
  %588 = vmatpush1.xpose.msra.mxu0 0.0
  %589 = vmatprep.subr.mxu0 0.0
  %590 = vmatpush1.xpose.msra.mxu0 0.0
  %591 = vmatprep.subr.mxu0 0.0
  %592 = vmatpush1.xpose.msra.mxu0 0.0
  %593 = vmatprep.mubr.f32.mxu0 0.0
  %594 = vmatmul.mubr.f32.gmra.mrb[0].mxu0 %v479
  %v595 = vpop.f32.mrb[0].mxu0
  %v596 = vadd.f32 %v443, %v595
  %v597 = vpop.f32.mrb[0].mxu0
  %598 = vmatprep.mubr.f32.mxu0 0.0
  %599 = vmatmul.mubr.f32.gmra.mrb[0].mxu0 %v482
  %v600 = vpop.f32.mrb[0].mxu0
  %v601 = vadd.f32 %v443, %v600
  %v602 = vpop.f32.mrb[0].mxu0
  %603 = vmatprep.mubr.f32.mxu0 0.0
  %604 = vmatmul.mubr.f32.gmra.mrb[0].mxu0 %v485
  %v605 = vpop.f32.mrb[0].mxu0
  %v606 = vadd.f32 %v443, %v605
  %v607 = vpop.f32.mrb[0].mxu0
  %608 = vmatprep.mubr.f32.mxu0 0.0
  %609 = vmatmul.mubr.f32.gmra.mrb[0].mxu0 %v488
  %v610 = vpop.f32.mrb[0].mxu0
  %v611 = vadd.f32 %v443, %v610
  %v612 = vpop.f32.mrb[0].mxu0
  %613 = vmatprep.mubr.f32.mxu0 0.0
  %614 = vmatmul.mubr.f32.gmra.mrb[0].mxu0 %v491
  %v615 = vpop.f32.mrb[0].mxu0
  %v616 = vadd.f32 %v443, %v615
  %v617 = vpop.f32.mrb[0].mxu0
  %618 = vmatprep.mubr.f32.mxu0 0.0
  %619 = vmatmul.mubr.f32.gmra.mrb[0].mxu0 %v494
  %v620 = vpop.f32.mrb[0].mxu0
  %v621 = vadd.f32 %v443, %v620
  %v622 = vpop.f32.mrb[0].mxu0
  %623 = vmatprep.mubr.f32.mxu0 0.0
  %624 = vmatmul.mubr.f32.gmra.mrb[0].mxu0 %v497
  %v625 = vpop.f32.mrb[0].mxu0
  %v626 = vadd.f32 %v443, %v625
  %v627 = vpop.f32.mrb[0].mxu0
  %628 = vmatprep.mubr.f32.mxu0 0.0
  %629 = vmatmul.mubr.f32.gmra.mrb[0].mxu0 %v500
  %v630 = vpop.f32.mrb[0].mxu0
  %v631 = vadd.f32 %v443, %v630
  %v632 = vpop.f32.mrb[0].mxu0
  %633 = vmatprep.mubr.f32.mxu0 0.0
  %634 = vmatmul.mubr.f32.gmra.mrb[0].mxu0 %v503
  %v635 = vpop.f32.mrb[0].mxu0
  %v636 = vadd.f32 %v443, %v635
  %v637 = vpop.f32.mrb[0].mxu0
  %638 = vmatprep.mubr.f32.mxu0 0.0
  %639 = vmatmul.mubr.f32.gmra.mrb[0].mxu0 %v506
  %v640 = vpop.f32.mrb[0].mxu0
  %v641 = vadd.f32 %v443, %v640
  %v642 = vpop.f32.mrb[0].mxu0
  %643 = vmatprep.mubr.f32.mxu0 0.0
  %644 = vmatmul.mubr.f32.gmra.mrb[0].mxu0 %v509
  %v645 = vpop.f32.mrb[0].mxu0
  %v646 = vadd.f32 %v443, %v645
  %v647 = vpop.f32.mrb[0].mxu0
  %648 = vmatprep.mubr.f32.mxu0 0.0
  %649 = vmatmul.mubr.f32.gmra.mrb[0].mxu0 %v512
  %v650 = vpop.f32.mrb[0].mxu0
  %v651 = vadd.f32 %v443, %v650
  %v652 = vpop.f32.mrb[0].mxu0
  %653 = vmatprep.mubr.f32.mxu0 0.0
  %654 = vmatmul.mubr.f32.gmra.mrb[0].mxu0 %v515
  %v655 = vpop.f32.mrb[0].mxu0
  %v656 = vadd.f32 %v443, %v655
  %v657 = vpop.f32.mrb[0].mxu0
  %658 = vmatprep.mubr.f32.mxu0 0.0
  %659 = vmatmul.mubr.f32.gmra.mrb[0].mxu0 %v518
  %v660 = vpop.f32.mrb[0].mxu0
  %v661 = vadd.f32 %v443, %v660
  %v662 = vpop.f32.mrb[0].mxu0
  %663 = vmatprep.mubr.f32.mxu0 0.0
  %664 = vmatmul.mubr.f32.gmra.mrb[0].mxu0 %v521
  %v665 = vpop.f32.mrb[0].mxu0
  %v666 = vadd.f32 %v443, %v665
  %v667 = vpop.f32.mrb[0].mxu0
  %668 = vmatprep.mubr.f32.mxu0 0.0
  %669 = vmatmul.mubr.f32.gmra.mrb[0].mxu0 %v524
  %v670 = vpop.f32.mrb[0].mxu0
  %v671 = vadd.f32 %v443, %v670
  %v672 = vpop.f32.mrb[0].mxu0
  %673 = vdwg.mxu0
  %vm674 = vcmask 31744
  %675 = vst.msk [vmem:[%s9] sm:$0xff] %vm674, %v596
  %676 = vst.msk [vmem:[%s9 + $0x8] sm:$0xff] %vm674, %v601
  %677 = vst.msk [vmem:[%s9 + $0x10] sm:$0xff] %vm674, %v606
  %678 = vst.msk [vmem:[%s9 + $0x18] sm:$0xff] %vm674, %v611
  %679 = vst.msk [vmem:[%s9 + $0x20] sm:$0xff] %vm674, %v616
  %680 = vst.msk [vmem:[%s9 + $0x28] sm:$0xff] %vm674, %v621
  %681 = vst.msk [vmem:[%s9 + $0x30] sm:$0xff] %vm674, %v626
  %682 = vst.msk [vmem:[%s9 + $0x38] sm:$0xff] %vm674, %v631
  %683 = vst.msk [vmem:[%s9 + $0x40] sm:$0xff] %vm674, %v636
  %684 = vst.msk [vmem:[%s9 + $0x48] sm:$0xff] %vm674, %v641
  %685 = vst.msk [vmem:[%s9 + $0x50] sm:$0xff] %vm674, %v646
  %686 = vst.msk [vmem:[%s9 + $0x58] sm:$0xff] %vm674, %v651
  %687 = vst.msk [vmem:[%s9 + $0x60] sm:$0xff] %vm674, %v656
  %688 = vst.msk [vmem:[%s9 + $0x68] sm:$0xff] %vm674, %v661
  %689 = vst.msk [vmem:[%s9 + $0x70] sm:$0xff] %vm674, %v666
  %690 = vst.msk [vmem:[%s9 + $0x78] sm:$0xff] %vm674, %v671
  // Predicated region
  $region38: #{tpu_custom_call.1} parent=0 // pred_check
    _
  $region39: #{tpu_custom_call.1} parent=0 // pred_check_branch
    %692 = sbr.rel (0) target = $region41
  $region40: #{tpu_custom_call.1} parent=0 // pred_region
    _
  $region41: #{tpu_custom_call.1} parent=0 // pred_fallthru
    _
  // Predicated region
  $region42: #{tpu_custom_call.1} parent=0 // pred_check
    _
  $region43: #{tpu_custom_call.1} parent=0 // pred_check_branch
    %694 = sbr.rel (0) target = $region45
  $region44: #{tpu_custom_call.1} parent=0 // pred_region
    _
  $region45: #{tpu_custom_call.1} parent=0 // pred_fallthru
    _

</llo_original>
